<compile_context>
chip_gen: v6e
topology: v6e:2x2x1
jax: 0.10.0
libtpu: 0.0.40
codegen_flags: <defaults>
</compile_context>

<pallas_src>
import functools

import jax
import jax.numpy as jnp
from jax.experimental import pallas as pl
from jax.experimental.pallas import tpu as pltpu


def _patch_position_kernel(patches_ref, w_ref, bias_ref, cls_ref, pos_ref, *rest,
                           dropout_p, apply_dropout):
    """One grid step = block_b batch elements.

    patches_ref: (block_b, N+1, K) bf16 -- row 0 of each batch is all-zero (cls slot)
    w_ref:       (K, D)            bf16
    bias_ref:    (1, D)            f32
    cls_ref:     (block_b, 1, D)   f32
    pos_ref:     (1, N+1, D)       f32
    rand_ref:    (block_b, N+1, D) f32 uniforms (present only when dropout is applied)
    out_ref:     (block_b, N+1, D) output dtype
    """
    if apply_dropout:
        rand_ref, out_ref = rest
    else:
        (out_ref,) = rest

    block_b, n1, _ = patches_ref.shape
    d = w_ref.shape[1]

    # Invariants hoisted out of the per-batch loop.
    w = w_ref[...]
    bias32 = bias_ref[...].astype(jnp.float32)                       # (1, D)
    pos32 = pos_ref[0].astype(jnp.float32)                           # (N+1, D)
    is_cls_row = jax.lax.broadcasted_iota(jnp.int32, (n1, d), 0) == 0
    scale = 1.0 / (1.0 - dropout_p) if apply_dropout else 1.0

    # Unrolled over the (small) per-step batch tile: back-to-back (N+1, K)@(K, D)
    # MXU matmuls with f32 accumulation.  (Not merged into one (block_b*(N+1), K)
    # matmul: that would need an in-kernel collapse of non-tile-aligned sublane
    # dims, which Mosaic may reject; back-to-back dots within one grid step still
    # amortize all per-step overhead.)
    for t in range(block_b):
        emb = jnp.dot(patches_ref[t], w, preferred_element_type=jnp.float32)   # (N+1, D)
        # Row 0 carried a zero patch row: substitute the class token for the conv
        # bias there; add bias everywhere else; add position embedding in one shot.
        add = jnp.where(is_cls_row, cls_ref[t].astype(jnp.float32), bias32)
        full = emb + add + pos32
        if apply_dropout:
            keep = rand_ref[t] >= dropout_p          # one compare + select
            full = jnp.where(keep, full * scale, 0.0)
        out_ref[t] = full.astype(out_ref.dtype)      # aligned full-slice store


def patch_position_block(x, conv_w, conv_b, cls_tok, pos_emb, *, patch_size,
                         dropout_p=0.1, train=True, rng_key=None,
                         block_b=None, mxu_dtype=jnp.bfloat16):
    """x: (B, C, H, W) NCHW.  Returns (B, N+1, D) = dropout(cat(cls, patch_emb) + pos)."""
    B, C, H, W = x.shape
    P = patch_size
    D = conv_w.shape[0]
    Hp, Wp = H // P, W // P
    N = Hp * Wp
    K = C * P * P

    # Unfold into patches (B, N, K); patch-inner order (C, ph, pw) matches
    # Conv2d(kernel=stride=P).  Prepend one zero row per batch (class-token slot)
    # so the kernel can emit all N+1 rows uniformly with aligned stores.
    # TODO(synk): this reshape/transpose/pad is an extra HBM round trip; fusing the
    # unfold into the kernel's input DMA (index_map over patch rows) or using
    # allow_input_fusion would remove it.
    patches = (x.astype(mxu_dtype)
               .reshape(B, C, Hp, P, Wp, P)
               .transpose(0, 2, 4, 1, 3, 5)
               .reshape(B, N, K))
    patches = jnp.pad(patches, ((0, 0), (1, 0), (0, 0)))             # (B, N+1, K)

    w2d = conv_w.reshape(D, K).T.astype(mxu_dtype)                   # (K, D)
    bias = conv_b.reshape(1, D).astype(jnp.float32)
    cls32 = cls_tok.astype(jnp.float32)                              # (B, 1, D)
    pos32 = pos_emb.astype(jnp.float32)                              # (1, N+1, D)

    # Batch tile: aim for a few hundred matmul rows per grid step to amortize the
    # ~0.35 us/step overhead, while keeping at least 2 grid steps when B > 1 so
    # v7x's two TensorCores both get work.
    if block_b is None:
        block_b = max(1, min(B, pl.cdiv(256, N + 1), 8))
        while B % block_b:
            block_b -= 1
        if B > 1 and B // block_b < 2:
            block_b = max(d for d in range(1, block_b) if B % d == 0)
    assert B % block_b == 0
    grid = (B // block_b,)

    apply_dropout = bool(train) and float(dropout_p) > 0.0

    args = [patches, w2d, bias, cls32, pos32]
    # NOTE: w2d / bias / pos32 are grid-invariant; on JAX versions where
    # BlockSpec(..., pipeline_mode=pl.Buffered(1)) is available they can be
    # single-buffered to free VMEM for larger batch tiles.
    in_specs = [
        pl.BlockSpec((block_b, N + 1, K), lambda b: (b, 0, 0)),      # patches (+cls slot)
        pl.BlockSpec((K, D), lambda b: (0, 0)),                      # projection weight
        pl.BlockSpec((1, D), lambda b: (0, 0)),                      # conv bias
        pl.BlockSpec((block_b, 1, D), lambda b: (b, 0, 0)),          # class token
        pl.BlockSpec((1, N + 1, D), lambda b: (0, 0, 0)),            # position embedding
    ]
    if apply_dropout:
        if rng_key is None:
            rng_key = jax.random.PRNGKey(0)
        # TODO(synk): on TPU-only deployments, pltpu.prng_random_bits inside the kernel
        # would avoid streaming this mask from HBM; it is generated here because the
        # hardware PRNG primitives do not lower on the interpret/CPU path.
        rand = jax.random.uniform(rng_key, (B, N + 1, D), dtype=jnp.float32)
        args.append(rand)
        in_specs.append(pl.BlockSpec((block_b, N + 1, D), lambda b: (b, 0, 0)))

    kernel = functools.partial(_patch_position_kernel,
                               dropout_p=float(dropout_p),
                               apply_dropout=apply_dropout)
    return pl.pallas_call(
        kernel,
        out_shape=jax.ShapeDtypeStruct((B, N + 1, D), x.dtype),
        grid=grid,
        in_specs=in_specs,
        out_specs=pl.BlockSpec((block_b, N + 1, D), lambda b: (b, 0, 0)),
        compiler_params=pltpu.CompilerParams(dimension_semantics=("parallel",)),
    )(*args)


def _reference_eval(x, conv_w, conv_b, cls_tok, pos_emb, patch_size):
    """Pure-JAX reference (dropout disabled): Conv2d patch embed + cls token + pos embed."""
    B = x.shape[0]
    P = patch_size
    conv = jax.lax.conv_general_dilated(
        x, conv_w, window_strides=(P, P), padding="VALID",
        dimension_numbers=("NCHW", "OIHW", "NCHW"))                  # (B, D, Hp, Wp)
    D = conv.shape[1]
    emb = conv.reshape(B, D, -1).transpose(0, 2, 1) + conv_b         # (B, N, D)
    return jnp.concatenate([cls_tok, emb], axis=1) + pos_emb


if __name__ == "__main__":
    # Small shapes consistent with the module: B=2, C=4, H=W=16, patch=8 -> N=4, D=32.
    B, C, H, W = 2, 4, 16, 16
    P, D = 8, 32
    N = (H // P) * (W // P)

    key = jax.random.PRNGKey(0)
    kx, kw, kb, kc, kp, kd = jax.random.split(key, 6)
    x = jax.random.normal(kx, (B, C, H, W), dtype=jnp.float32)
    conv_w = jax.random.normal(kw, (D, C, P, P), dtype=jnp.float32) * 0.02   # Conv2d weight
    conv_b = jax.random.normal(kb, (D,), dtype=jnp.float32) * 0.02           # Conv2d bias
    cls_tok = jax.random.uniform(kc, (B, 1, D), dtype=jnp.float32)           # torch.rand(B,1,D)
    pos_emb = jax.random.uniform(kp, (1, N + 1, D), dtype=jnp.float32)       # torch.rand(1,N+1,D)

    # --- eval mode (dropout off): compare against pure-JAX references ---
    out_eval = patch_position_block(x, conv_w, conv_b, cls_tok, pos_emb,
                                    patch_size=P, dropout_p=0.1, train=False)
    out_eval = jax.block_until_ready(out_eval)
    assert out_eval.shape == (B, N + 1, D)

    # Tight check: reference with the same bf16 input rounding (only summation order differs).
    xq = x.astype(jnp.bfloat16).astype(jnp.float32)
    wq = conv_w.astype(jnp.bfloat16).astype(jnp.float32)
    ref_q = _reference_eval(xq, wq, conv_b, cls_tok, pos_emb, P)
    assert jnp.allclose(out_eval, ref_q, rtol=1e-3, atol=1e-3)

    # Loose sanity check against the full-f32 reference (bf16 MXU inputs).
    ref_f32 = _reference_eval(x, conv_w, conv_b, cls_tok, pos_emb, P)
    assert jnp.allclose(out_eval, ref_f32, rtol=5e-2, atol=5e-2)

    # --- train mode (dropout p=0.1 applied inside the kernel) ---
    out_train = patch_position_block(x, conv_w, conv_b, cls_tok, pos_emb,
                                     patch_size=P, dropout_p=0.1, train=True,
                                     rng_key=kd)
    out_train = jax.block_until_ready(out_train)
    assert out_train.shape == (B, N + 1, D)
    n_zero = int(jnp.sum(out_train == 0.0))
    assert 0 < n_zero < out_train.size                 # some, but not all, elements dropped
    scale = 1.0 / (1.0 - 0.1)
    expected = jnp.where(out_train != 0.0, out_eval * scale, 0.0)
    assert jnp.allclose(out_train, expected, rtol=1e-5, atol=1e-5)

    print("KERNEL_OK")
</pallas_src>

<mosaic_0001>
module attributes {stable_mosaic.version = 11 : i64} {
  func.func @_patch_position_kernel(%arg0: i32, %arg1: memref<1x5x256xbf16, #tpu.memory_space<vmem>>, %arg2: memref<256x32xbf16, #tpu.memory_space<vmem>>, %arg3: memref<1x32xf32, #tpu.memory_space<vmem>>, %arg4: memref<1x1x32xf32, #tpu.memory_space<vmem>>, %arg5: memref<1x5x32xf32, #tpu.memory_space<vmem>>, %arg6: memref<1x5x32xf32, #tpu.memory_space<vmem>>) attributes {dimension_semantics = [#tpu.dimension_semantics<parallel>], iteration_bounds = array<i64: 2>, scalar_prefetch = 0 : i64, scratch_operands = 0 : i64, tpu.core_type = #tpu.core_type<tc>, window_params = [{transform_indices = @transform_0, window_bounds = array<i64: 1, 5, 256>}, {pipeline_mode = #tpu.pipeline_mode<synchronous>, transform_indices = @transform_1, window_bounds = array<i64: 256, 32>}, {pipeline_mode = #tpu.pipeline_mode<synchronous>, transform_indices = @transform_2, window_bounds = array<i64: 1, 32>}, {transform_indices = @transform_3, window_bounds = array<i64: 1, 1, 32>}, {pipeline_mode = #tpu.pipeline_mode<synchronous>, transform_indices = @transform_4, window_bounds = array<i64: 1, 5, 32>}, {transform_indices = @transform_5, window_bounds = array<i64: 1, 5, 32>}]} {
    %c0 = arith.constant 0 : index
    %c0_0 = arith.constant 0 : index
    %0 = vector.load %arg2[%c0, %c0_0] : memref<256x32xbf16, #tpu.memory_space<vmem>>, vector<256x32xbf16>
    %c0_1 = arith.constant 0 : index
    %c0_2 = arith.constant 0 : index
    %1 = vector.load %arg3[%c0_1, %c0_2] : memref<1x32xf32, #tpu.memory_space<vmem>>, vector<1x32xf32>
    %c0_3 = arith.constant 0 : index
    %c0_4 = arith.constant 0 : index
    %c0_5 = arith.constant 0 : index
    %2 = vector.load %arg5[%c0_3, %c0_4, %c0_5] : memref<1x5x32xf32, #tpu.memory_space<vmem>>, vector<1x5x32xf32>
    %3 = vector.shape_cast %2 : vector<1x5x32xf32> to vector<5x32xf32>
    %4 = tpu.iota {dimensions = array<i32: 0>} : vector<5x32xi32>
    %c0_i32 = arith.constant 0 : i32
    %5 = vector.broadcast %c0_i32 : i32 to vector<5x32xi32>
    %6 = arith.cmpi eq, %4, %5 : vector<5x32xi32>
    %c0_6 = arith.constant 0 : index
    %c0_7 = arith.constant 0 : index
    %c0_8 = arith.constant 0 : index
    %7 = vector.load %arg1[%c0_6, %c0_7, %c0_8] : memref<1x5x256xbf16, #tpu.memory_space<vmem>>, vector<1x5x256xbf16>
    %8 = vector.shape_cast %7 : vector<1x5x256xbf16> to vector<5x256xbf16>
    %cst = arith.constant dense<0.000000e+00> : vector<5x32xf32>
    %9 = tpu.matmul %8, %0, %cst {dimension_numbers = #tpu.dot_dimension_numbers<[1], [0], [0], [1], [0, 0, 1, 1], [], []>} : vector<5x256xbf16>, vector<256x32xbf16>, vector<5x32xf32> -> vector<5x32xf32>
    %c0_9 = arith.constant 0 : index
    %c0_10 = arith.constant 0 : index
    %c0_11 = arith.constant 0 : index
    %10 = vector.load %arg4[%c0_9, %c0_10, %c0_11] : memref<1x1x32xf32, #tpu.memory_space<vmem>>, vector<1x1x32xf32>
    %11 = vector.shape_cast %10 : vector<1x1x32xf32> to vector<1x32xf32>
    %12 = vector.shape_cast %11 : vector<1x32xf32> to vector<1x32xf32>
    %13 = vector.broadcast %12 : vector<1x32xf32> to vector<5x32xf32>
    %14 = vector.shape_cast %1 : vector<1x32xf32> to vector<1x32xf32>
    %15 = vector.broadcast %14 : vector<1x32xf32> to vector<5x32xf32>
    %16 = arith.select %6, %13, %15 : vector<5x32xi1>, vector<5x32xf32>
    %17 = arith.addf %9, %16 : vector<5x32xf32>
    %18 = arith.addf %17, %3 : vector<5x32xf32>
    %c0_12 = arith.constant 0 : index
    %c0_13 = arith.constant 0 : index
    %c0_14 = arith.constant 0 : index
    %19 = vector.load %arg6[%c0_12, %c0_13, %c0_14] : memref<1x5x32xf32, #tpu.memory_space<vmem>>, vector<1x5x32xf32>
    %20 = vector.shape_cast %19 : vector<1x5x32xf32> to vector<5x32xf32>
    %21 = vector.shape_cast %18 : vector<5x32xf32> to vector<1x5x32xf32>
    tpu.vector_store %arg6[%c0_12, %c0_13, %c0_14], %21 {strides = array<i32>} : memref<1x5x32xf32, #tpu.memory_space<vmem>>, vector<1x5x32xf32>,
    return
  }
  func.func @transform_0(%arg0: i32) -> (i32, i32, i32) {
    %c0_i32 = arith.constant 0 : i32
    %c0_i32_0 = arith.constant 0 : i32
    %c0_i32_1 = arith.constant 0 : i32
    return %arg0, %c0_i32, %c0_i32_0 : i32, i32, i32
  }
  func.func @transform_1(%arg0: i32) -> (i32, i32) {
    %c0_i32 = arith.constant 0 : i32
    %c0_i32_0 = arith.constant 0 : i32
    %c0_i32_1 = arith.constant 0 : i32
    return %c0_i32, %c0_i32_0 : i32, i32
  }
  func.func @transform_2(%arg0: i32) -> (i32, i32) {
    %c0_i32 = arith.constant 0 : i32
    %c0_i32_0 = arith.constant 0 : i32
    %c0_i32_1 = arith.constant 0 : i32
    return %c0_i32, %c0_i32_0 : i32, i32
  }
  func.func @transform_3(%arg0: i32) -> (i32, i32, i32) {
    %c0_i32 = arith.constant 0 : i32
    %c0_i32_0 = arith.constant 0 : i32
    %c0_i32_1 = arith.constant 0 : i32
    return %arg0, %c0_i32, %c0_i32_0 : i32, i32, i32
  }
  func.func @transform_4(%arg0: i32) -> (i32, i32, i32) {
    %c0_i32 = arith.constant 0 : i32
    %c0_i32_0 = arith.constant 0 : i32
    %c0_i32_1 = arith.constant 0 : i32
    %c0_i32_2 = arith.constant 0 : i32
    return %c0_i32, %c0_i32_0, %c0_i32_1 : i32, i32, i32
  }
  func.func @transform_5(%arg0: i32) -> (i32, i32, i32) {
    %c0_i32 = arith.constant 0 : i32
    %c0_i32_0 = arith.constant 0 : i32
    %c0_i32_1 = arith.constant 0 : i32
    return %arg0, %c0_i32, %c0_i32_0 : i32, i32, i32
  }
}

</mosaic_0001>

<llo_original>
// kernel: tpu_custom_call.1
$region0: #{tpu_custom_call.1}
  #allocation0 [shape = 'u32[]', space=smem, size = 0x4, offset = 0x4, fixed_abs, tag = 'smem constant byte address 0x4 - core index']
  #allocation1 [shape = 'u32[144,128]{1,0:T(1,128)}', space=vmem, size = 0x12000, scoped, tag = 'internal scratch']
  %s0 = inlined_call_operand.vmem [shape: bf16[2,5,256], index: 0, kind: input, shape index: {}]
  %s1 = inlined_call_operand.vmem [shape: bf16[256,32], index: 1, kind: input, shape index: {}]
  %s2 = inlined_call_operand.vmem [shape: f32[1,32], index: 2, kind: input, shape index: {}]
  %s3 = inlined_call_operand.vmem [shape: f32[2,1,32], index: 3, kind: input, shape index: {}]
  %s4 = inlined_call_operand.vmem [shape: f32[1,5,32], index: 4, kind: input, shape index: {}]
  %s5 = inlined_call_operand.vmem [shape: f32[2,5,32], index: 5, kind: output, shape index: {}]
  %s6 = sld [smem:[#allocation0]]
  $region53: #{tpu_custom_call.1} parent=0
    _
  %s8 = ssub.s32 1, %s6
  %s9 = scalar_select 0, %s8, %s6
  loop: start=0, step=1, limit=4
  $region2: #{tpu_custom_call.1} parent=0 // loop_pre_header
    _
  $region3: #{tpu_custom_call.1} parent=0 // loop_header
    %s11 = sphi 0, %s15
    %p12 = scmp.ge.s32.totalorder %s11, 4
    %s21 = sphi 0, %s23
    %s24 = sphi 0, %s21
    %s25 = sphi 0, %s24
    %s41 = sphi 0, %s25
    %s45 = sphi 0, %s45
    %s47 = sphi 0, %s45
    %s48 = sphi 0, %s47
    %s62 = sphi 0, %s48
    %s66 = sphi 0, %s66
    %s68 = sphi 0, %s66
    %s69 = sphi 0, %s68
    %s83 = sphi 0, %s69
    %s89 = sphi 0, %s91
    %s92 = sphi 0, %s89
    %s93 = sphi 0, %s92
    %s109 = sphi 0, %s93
    %s113 = sphi 0, %s113
    %s115 = sphi 0, %s113
    %s116 = sphi 0, %s115
    %s130 = sphi 0, %s116
    %s136 = sphi 0, %s138
    %s139 = sphi 0, %s136
    %s140 = sphi 0, %s139
    %s156 = sphi 0, %s140
  $region4: #{tpu_custom_call.1} parent=0 // loop_header_branch
    %14 = sbr.rel (%p12) target = $region8
  $region5: #{tpu_custom_call.1} parent=0 // loop_body
    %s16 = ssub.s32 %s11, 1
    %s17 = ssub.s32 %s11, 2
    %s18 = sadd.s32 %s11, 1
    %s19 = ssub.s32 %s11, %s18
    %p20 = scmp.eq.s32.totalorder %s19, 0
    %s22 = sadd.s32 %s21, 1
    %s23 = scalar_select %p20, %s21, %s22
    %p26 = pneg %p20
    %p27 = scmp.eq.s32.totalorder %s11, 1
    %p28 = por %p26, %p27
    %p29 = scmp.ne.s32.totalorder %s21, %s24
    %p30 = scmp.eq.s32.totalorder %s11, 0
    %p31 = por %p29, %p30
    %p32 = scmp.ne.s32.totalorder %s21, %s24
    %p33 = scmp.eq.s32.totalorder %s16, 1
    %p34 = por %p32, %p33
    %p35 = scmp.ne.s32.totalorder %s24, %s25
    %p36 = scmp.eq.s32.totalorder %s16, 0
    %p37 = por %p35, %p36
    %p38 = scmp.ne.s32.totalorder %s24, %s25
    %p39 = scmp.eq.s32.totalorder %s17, 1
    %p40 = por %p38, %p39
    %p42 = scmp.ne.s32.totalorder %s25, %s41
    %p43 = scmp.eq.s32.totalorder %s17, 0
    %p44 = por %p42, %p43
    %s46 = sadd.s32 %s45, 1
    %p49 = scmp.eq.s32.totalorder %s11, 1
    %p50 = scmp.ne.s32.totalorder %s45, %s47
    %p51 = scmp.eq.s32.totalorder %s11, 0
    %p52 = por %p50, %p51
    %p53 = scmp.ne.s32.totalorder %s45, %s47
    %p54 = scmp.eq.s32.totalorder %s16, 1
    %p55 = por %p53, %p54
    %p56 = scmp.ne.s32.totalorder %s47, %s48
    %p57 = scmp.eq.s32.totalorder %s16, 0
    %p58 = por %p56, %p57
    %p59 = scmp.ne.s32.totalorder %s47, %s48
    %p60 = scmp.eq.s32.totalorder %s17, 1
    %p61 = por %p59, %p60
    %p63 = scmp.ne.s32.totalorder %s48, %s62
    %p64 = scmp.eq.s32.totalorder %s17, 0
    %p65 = por %p63, %p64
    %s67 = sadd.s32 %s66, 1
    %p70 = scmp.eq.s32.totalorder %s11, 1
    %p71 = scmp.ne.s32.totalorder %s66, %s68
    %p72 = scmp.eq.s32.totalorder %s11, 0
    %p73 = por %p71, %p72
    %p74 = scmp.ne.s32.totalorder %s66, %s68
    %p75 = scmp.eq.s32.totalorder %s16, 1
    %p76 = por %p74, %p75
    %p77 = scmp.ne.s32.totalorder %s68, %s69
    %p78 = scmp.eq.s32.totalorder %s16, 0
    %p79 = por %p77, %p78
    %p80 = scmp.ne.s32.totalorder %s68, %s69
    %p81 = scmp.eq.s32.totalorder %s17, 1
    %p82 = por %p80, %p81
    %p84 = scmp.ne.s32.totalorder %s69, %s83
    %p85 = scmp.eq.s32.totalorder %s17, 0
    %p86 = por %p84, %p85
    %s87 = ssub.s32 %s11, %s18
    %p88 = scmp.eq.s32.totalorder %s87, 0
    %s90 = sadd.s32 %s89, 1
    %s91 = scalar_select %p88, %s89, %s90
    %p94 = pneg %p88
    %p95 = scmp.eq.s32.totalorder %s11, 1
    %p96 = por %p94, %p95
    %p97 = scmp.ne.s32.totalorder %s89, %s92
    %p98 = scmp.eq.s32.totalorder %s11, 0
    %p99 = por %p97, %p98
    %p100 = scmp.ne.s32.totalorder %s89, %s92
    %p101 = scmp.eq.s32.totalorder %s16, 1
    %p102 = por %p100, %p101
    %p103 = scmp.ne.s32.totalorder %s92, %s93
    %p104 = scmp.eq.s32.totalorder %s16, 0
    %p105 = por %p103, %p104
    %p106 = scmp.ne.s32.totalorder %s92, %s93
    %p107 = scmp.eq.s32.totalorder %s17, 1
    %p108 = por %p106, %p107
    %p110 = scmp.ne.s32.totalorder %s93, %s109
    %p111 = scmp.eq.s32.totalorder %s17, 0
    %p112 = por %p110, %p111
    %s114 = sadd.s32 %s113, 1
    %p117 = scmp.eq.s32.totalorder %s11, 1
    %p118 = scmp.ne.s32.totalorder %s113, %s115
    %p119 = scmp.eq.s32.totalorder %s11, 0
    %p120 = por %p118, %p119
    %p121 = scmp.ne.s32.totalorder %s113, %s115
    %p122 = scmp.eq.s32.totalorder %s16, 1
    %p123 = por %p121, %p122
    %p124 = scmp.ne.s32.totalorder %s115, %s116
    %p125 = scmp.eq.s32.totalorder %s16, 0
    %p126 = por %p124, %p125
    %p127 = scmp.ne.s32.totalorder %s115, %s116
    %p128 = scmp.eq.s32.totalorder %s17, 1
    %p129 = por %p127, %p128
    %p131 = scmp.ne.s32.totalorder %s116, %s130
    %p132 = scmp.eq.s32.totalorder %s17, 0
    %p133 = por %p131, %p132
    %s134 = ssub.s32 %s11, %s18
    %p135 = scmp.eq.s32.totalorder %s134, 0
    %s137 = sadd.s32 %s136, 1
    %s138 = scalar_select %p135, %s136, %s137
    %p141 = pneg %p135
    %p142 = scmp.eq.s32.totalorder %s11, 1
    %p143 = por %p141, %p142
    %p144 = scmp.ne.s32.totalorder %s136, %s139
    %p145 = scmp.eq.s32.totalorder %s11, 0
    %p146 = por %p144, %p145
    %p147 = scmp.ne.s32.totalorder %s136, %s139
    %p148 = scmp.eq.s32.totalorder %s16, 1
    %p149 = por %p147, %p148
    %p150 = scmp.ne.s32.totalorder %s139, %s140
    %p151 = scmp.eq.s32.totalorder %s16, 0
    %p152 = por %p150, %p151
    %p153 = scmp.ne.s32.totalorder %s139, %s140
    %p154 = scmp.eq.s32.totalorder %s17, 1
    %p155 = por %p153, %p154
    %p157 = scmp.ne.s32.totalorder %s140, %s156
    %p158 = scmp.eq.s32.totalorder %s17, 0
    %p159 = por %p157, %p158
    %p160 = scmp.le.s32.totalorder 1, %s11
    %p161 = scmp.lt.s32.totalorder %s11, 3
    %p162 = pnand %p160, %p161
    %p163 = pneg %p162
    // Predicated region
    $region9: #{tpu_custom_call.1} parent=5 // pred_check
      _
    $region10: #{tpu_custom_call.1} parent=5 // pred_check_branch
      %165 = sbr.rel (%p162) target = $region12
    $region11: #{tpu_custom_call.1} parent=5 // pred_region
      %s166 = ssub.s32 %s11, 1
      // Predicated region
      $region13: #{tpu_custom_call.1} parent=11 // pred_check
        %p167 = pneg %p58
      $region14: #{tpu_custom_call.1} parent=11 // pred_check_branch
        %169 = sbr.rel (%p167) target = $region16
      $region15: #{tpu_custom_call.1} parent=11 // pred_region
        _
      $region16: #{tpu_custom_call.1} parent=11 // pred_fallthru
        _
      // Predicated region
      $region17: #{tpu_custom_call.1} parent=11 // pred_check
        %p170 = pneg %p79
      $region18: #{tpu_custom_call.1} parent=11 // pred_check_branch
        %172 = sbr.rel (%p170) target = $region20
      $region19: #{tpu_custom_call.1} parent=11 // pred_region
        _
      $region20: #{tpu_custom_call.1} parent=11 // pred_fallthru
        _
      // Predicated region
      $region21: #{tpu_custom_call.1} parent=11 // pred_check
        %p173 = pneg %p126
      $region22: #{tpu_custom_call.1} parent=11 // pred_check_branch
        %175 = sbr.rel (%p173) target = $region24
      $region23: #{tpu_custom_call.1} parent=11 // pred_region
        _
      $region24: #{tpu_custom_call.1} parent=11 // pred_fallthru
        _
    $region12: #{tpu_custom_call.1} parent=5 // pred_fallthru
      _
    %p176 = scmp.lt.s32.totalorder %s11, 2
    // Predicated region
    $region25: #{tpu_custom_call.1} parent=5 // pred_check
      %p177 = pneg %p176
    $region26: #{tpu_custom_call.1} parent=5 // pred_check_branch
      %179 = sbr.rel (%p177) target = $region28
    $region27: #{tpu_custom_call.1} parent=5 // pred_region
      // Predicated region
      $region29: #{tpu_custom_call.1} parent=27 // pred_check
        %p180 = pneg %p31
      $region30: #{tpu_custom_call.1} parent=27 // pred_check_branch
        %182 = sbr.rel (%p180) target = $region32
      $region31: #{tpu_custom_call.1} parent=27 // pred_region
        %p183 = scmp.lt.s32.totalorder %s11, 1
        %s184 = scalar_select %p183, %s11, 1
        %s185 = smul.addr %s184, 2
        %s186 = smul.addr %s185, 4
        %s187 = scalar_lea.vmem %s0, %s186
      $region32: #{tpu_custom_call.1} parent=27 // pred_fallthru
        _
      // Predicated region
      $region33: #{tpu_custom_call.1} parent=27 // pred_check
        %p188 = pneg %p99
      $region34: #{tpu_custom_call.1} parent=27 // pred_check_branch
        %190 = sbr.rel (%p188) target = $region36
      $region35: #{tpu_custom_call.1} parent=27 // pred_region
        %p191 = scmp.lt.s32.totalorder %s11, 1
        %s192 = scalar_select %p191, %s11, 1
        %s193 = scalar_lea.vmem %s3, %s192
      $region36: #{tpu_custom_call.1} parent=27 // pred_fallthru
        _
    $region28: #{tpu_custom_call.1} parent=5 // pred_fallthru
      _
    %p194 = scmp.le.s32.totalorder 1, %s11
    %p195 = scmp.lt.s32.totalorder %s11, 3
    %p196 = pnand %p194, %p195
    %p197 = pneg %p196
    // Predicated region
    $region37: #{tpu_custom_call.1} parent=5 // pred_check
      _
    $region38: #{tpu_custom_call.1} parent=5 // pred_check_branch
      %199 = sbr.rel (%p196) target = $region40
    $region39: #{tpu_custom_call.1} parent=5 // pred_region
      %s200 = ssub.s32 %s11, 1
      %p201 = scmp.lt.s32.totalorder %s16, 1
      %s202 = scalar_select %p201, %s16, 1
      %s203 = smul.addr %s202, 2
      %s204 = smul.addr %s203, 4
      %s205 = scalar_lea.vmem %s0, %s204
      %p206 = pneg %p37
      %p207 = pneg %p34
      %p208 = pneg %p58
      %p209 = pneg %p55
      %p210 = pneg %p79
      %p211 = pneg %p76
      %p212 = scmp.lt.s32.totalorder %s16, 1
      %s213 = scalar_select %p212, %s16, 1
      %s214 = scalar_lea.vmem %s3, %s213
      %p215 = pneg %p105
      %p216 = pneg %p102
      %p217 = pneg %p126
      %p218 = pneg %p123
      %p219 = pneg %p152
      %p220 = pneg %p149
      %p221 = scmp.lt.s32.totalorder %s16, 1
      %s222 = scalar_select %p221, %s16, 1
      %s223 = smul.addr %s222, 8
      %s224 = scalar_lea.vmem %s5, %s223
      %p225 = scmp.lt.s32.totalorder %s16, 1
      %s226 = scalar_select %p225, %s16, 1
      %s227 = smul.addr %s226, 2
      %s228 = smul.addr %s227, 4
      %s229 = scalar_lea.vmem %s0, %s228
      %p230 = scmp.lt.s32.totalorder %s16, 1
      %s231 = scalar_select %p230, %s16, 1
      %s232 = scalar_lea.vmem %s3, %s231
      %p233 = scmp.lt.s32.totalorder %s16, 1
      %s234 = scalar_select %p233, %s16, 1
      %s235 = smul.addr %s234, 8
      %s236 = scalar_lea.vmem %s5, %s235
      %v238 = vld [vmem:[%s1] sm:$0xf]
      %v239 = vld [vmem:[%s1 + $0x4] sm:$0xf]
      %v240 = vld [vmem:[%s1 + $0x8] sm:$0xf]
      %v241 = vld [vmem:[%s1 + $0xc] sm:$0xf]
      %v242 = vld [vmem:[%s1 + $0x10] sm:$0xf]
      %v243 = vld [vmem:[%s1 + $0x14] sm:$0xf]
      %v244 = vld [vmem:[%s1 + $0x18] sm:$0xf]
      %v245 = vld [vmem:[%s1 + $0x1c] sm:$0xf]
      %v246 = vld [vmem:[%s1 + $0x20] sm:$0xf]
      %v247 = vld [vmem:[%s1 + $0x24] sm:$0xf]
      %v248 = vld [vmem:[%s1 + $0x28] sm:$0xf]
      %v249 = vld [vmem:[%s1 + $0x2c] sm:$0xf]
      %v250 = vld [vmem:[%s1 + $0x30] sm:$0xf]
      %v251 = vld [vmem:[%s1 + $0x34] sm:$0xf]
      %v252 = vld [vmem:[%s1 + $0x38] sm:$0xf]
      %v253 = vld [vmem:[%s1 + $0x3c] sm:$0xf]
      %v254 = vld [vmem:[%s1 + $0x40] sm:$0xf]
      %v255 = vld [vmem:[%s1 + $0x44] sm:$0xf]
      %v256 = vld [vmem:[%s1 + $0x48] sm:$0xf]
      %v257 = vld [vmem:[%s1 + $0x4c] sm:$0xf]
      %v258 = vld [vmem:[%s1 + $0x50] sm:$0xf]
      %v259 = vld [vmem:[%s1 + $0x54] sm:$0xf]
      %v260 = vld [vmem:[%s1 + $0x58] sm:$0xf]
      %v261 = vld [vmem:[%s1 + $0x5c] sm:$0xf]
      %v262 = vld [vmem:[%s1 + $0x60] sm:$0xf]
      %v263 = vld [vmem:[%s1 + $0x64] sm:$0xf]
      %v264 = vld [vmem:[%s1 + $0x68] sm:$0xf]
      %v265 = vld [vmem:[%s1 + $0x6c] sm:$0xf]
      %v266 = vld [vmem:[%s1 + $0x70] sm:$0xf]
      %v267 = vld [vmem:[%s1 + $0x74] sm:$0xf]
      %v268 = vld [vmem:[%s1 + $0x78] sm:$0xf]
      %v269 = vld [vmem:[%s1 + $0x7c] sm:$0xf]
      %v270 = vld [vmem:[%s2] sm:$0x1]
      %v271 = vld [vmem:[%s4] sm:$0x1f]
      %v272 = vlaneseq
      %v273 = vshrl.u32 %v272, 7
      %vm274 = vcmp.eq.s32.totalorder %v273, 0
      %v275 = vld [vmem:[%s229] sm:$0x77]
      %v276 = vld [vmem:[%s232] sm:$0x1]
      %v278 = vlaneseq
      %v279 = vshrl.u32 %v278, 7
      %v280 = vsub.s32 0, %v279
      %v281 = vrot.slane %v276, %v280
      %v284 = vlaneseq
      %v285 = vshrl.u32 %v284, 7
      %v286 = vsub.s32 0, %v285
      %v287 = vrot.slane %v270, %v286
      %v289 = vsel %vm274, %v281, %v287
      %v291 = vunpack.c.l.b16 %v275
      %v292 = vunpack.c.h.b16 %v275
      %v293 = vpack.c.b16 %v291, %v291
      %v294 = vpack.c.b16 %v292, %v292
      %v329 = vunpack.c.l.b16 %v238
      %v330 = vunpack.c.l.b16 %v239
      %v331 = vunpack.c.l.b16 %v240
      %v332 = vunpack.c.l.b16 %v241
      %v333 = vunpack.c.l.b16 %v242
      %v334 = vunpack.c.l.b16 %v243
      %v335 = vunpack.c.l.b16 %v244
      %v336 = vunpack.c.l.b16 %v245
      %v337 = vunpack.c.l.b16 %v246
      %v338 = vunpack.c.l.b16 %v247
      %v339 = vunpack.c.l.b16 %v248
      %v340 = vunpack.c.l.b16 %v249
      %v341 = vunpack.c.l.b16 %v250
      %v342 = vunpack.c.l.b16 %v251
      %v343 = vunpack.c.l.b16 %v252
      %v344 = vunpack.c.l.b16 %v253
      %v345 = vunpack.c.l.b16 %v254
      %v346 = vunpack.c.l.b16 %v255
      %v347 = vunpack.c.l.b16 %v256
      %v348 = vunpack.c.l.b16 %v257
      %v349 = vunpack.c.l.b16 %v258
      %v350 = vunpack.c.l.b16 %v259
      %v351 = vunpack.c.l.b16 %v260
      %v352 = vunpack.c.l.b16 %v261
      %v353 = vunpack.c.l.b16 %v262
      %v354 = vunpack.c.l.b16 %v263
      %v355 = vunpack.c.l.b16 %v264
      %v356 = vunpack.c.l.b16 %v265
      %v357 = vunpack.c.l.b16 %v266
      %v358 = vunpack.c.l.b16 %v267
      %v359 = vunpack.c.l.b16 %v268
      %v360 = vunpack.c.l.b16 %v269
      %v361 = vpack.c.b16 %v330, %v329
      %v362 = vpack.c.b16 %v332, %v331
      %v363 = vpack.c.b16 %v334, %v333
      %v364 = vpack.c.b16 %v336, %v335
      %v365 = vpack.c.b16 %v338, %v337
      %v366 = vpack.c.b16 %v340, %v339
      %v367 = vpack.c.b16 %v342, %v341
      %v368 = vpack.c.b16 %v344, %v343
      %v369 = vpack.c.b16 %v346, %v345
      %v370 = vpack.c.b16 %v348, %v347
      %v371 = vpack.c.b16 %v350, %v349
      %v372 = vpack.c.b16 %v352, %v351
      %v373 = vpack.c.b16 %v354, %v353
      %v374 = vpack.c.b16 %v356, %v355
      %v375 = vpack.c.b16 %v358, %v357
      %v376 = vpack.c.b16 %v360, %v359
      %393 = vmatprep.subr.bf16.mxu0 0
      %394 = vmatpush1.bf16.msra.mxu0 %v368
      %395 = vmatprep.subr.bf16.mxu0 0
      %396 = vmatpush1.bf16.msra.mxu0 %v367
      %397 = vmatprep.subr.bf16.mxu0 0
      %398 = vmatpush1.bf16.msra.mxu0 %v366
      %399 = vmatprep.subr.bf16.mxu0 0
      %400 = vmatpush1.bf16.msra.mxu0 %v365
      %401 = vmatprep.subr.bf16.mxu0 0
      %402 = vmatpush1.bf16.msra.mxu0 %v364
      %403 = vmatprep.subr.bf16.mxu0 0
      %404 = vmatpush1.bf16.msra.mxu0 %v363
      %405 = vmatprep.subr.bf16.mxu0 0
      %406 = vmatpush1.bf16.msra.mxu0 %v362
      %407 = vmatprep.subr.bf16.mxu0 0
      %408 = vmatpush1.bf16.msra.mxu0 %v361
      %409 = vmatprep.subr.bf16.mxu0 0
      %410 = vmatpush2.bf16.msra.mxu0 %v376
      %411 = vmatprep.subr.bf16.mxu0 0
      %412 = vmatpush2.bf16.msra.mxu0 %v375
      %413 = vmatprep.subr.bf16.mxu0 0
      %414 = vmatpush2.bf16.msra.mxu0 %v374
      %415 = vmatprep.subr.bf16.mxu0 0
      %416 = vmatpush2.bf16.msra.mxu0 %v373
      %417 = vmatprep.subr.bf16.mxu0 0
      %418 = vmatpush2.bf16.msra.mxu0 %v372
      %419 = vmatprep.subr.bf16.mxu0 0
      %420 = vmatpush2.bf16.msra.mxu0 %v371
      %421 = vmatprep.subr.bf16.mxu0 0
      %422 = vmatpush2.bf16.msra.mxu0 %v370
      %423 = vmatprep.subr.bf16.mxu0 0
      %424 = vmatpush2.bf16.msra.mxu0 %v369
      %425 = vmatprep.mubr.bf16.mxu0 %v294
      %426 = vmatmul.mubr.bf16.gmra.mxu0 %v293
      %v427 = vpop.f32.mrf.mxu0
      %v428 = vadd.f32 %v289, %v427
      %v429 = vpop.f32.mrf.mxu0
      %v430 = vpop.f32.mrf.mxu0
      %v431 = vpop.f32.mrf.mxu0
      %432 = vdwg.mxu0
      %v433 = vadd.f32 %v428, %v271
      %vm434 = vcmask 258048
      %435 = vst.msk [vmem:[%s236] sm:$0x1f] %vm434, %v433
      %p436 = scmp.lt.s32.totalorder %s16, 1
      %s437 = scalar_select %p436, %s16, 1
      %s438 = smul.addr %s437, 8
      %s439 = scalar_lea.vmem %s5, %s438
      // Predicated region
      $region41: #{tpu_custom_call.1} parent=39 // pred_check
        %p440 = pneg %p149
      $region42: #{tpu_custom_call.1} parent=39 // pred_check_branch
        %442 = sbr.rel (%p440) target = $region44
      $region43: #{tpu_custom_call.1} parent=39 // pred_region
        _
      $region44: #{tpu_custom_call.1} parent=39 // pred_fallthru
        _
    $region40: #{tpu_custom_call.1} parent=5 // pred_fallthru
      _
    %p443 = scmp.le.s32.totalorder 2, %s11
    // Predicated region
    $region45: #{tpu_custom_call.1} parent=5 // pred_check
      %p444 = pneg %p443
    $region46: #{tpu_custom_call.1} parent=5 // pred_check_branch
      %446 = sbr.rel (%p444) target = $region48
    $region47: #{tpu_custom_call.1} parent=5 // pred_region
      %s447 = ssub.s32 %s11, 2
      // Predicated region
      $region49: #{tpu_custom_call.1} parent=47 // pred_check
        %p448 = pneg %p155
      $region50: #{tpu_custom_call.1} parent=47 // pred_check_branch
        %450 = sbr.rel (%p448) target = $region52
      $region51: #{tpu_custom_call.1} parent=47 // pred_region
        %p451 = scmp.lt.s32.totalorder %s17, 1
        %s452 = scalar_select %p451, %s17, 1
        %s453 = smul.addr %s452, 8
        %s454 = scalar_lea.vmem %s5, %s453
      $region52: #{tpu_custom_call.1} parent=47 // pred_fallthru
        _
    $region48: #{tpu_custom_call.1} parent=5 // pred_fallthru
      _
  $region6: #{tpu_custom_call.1} parent=0 // loop_footer
    %s15 = sadd.s32 1, %s11
  $region7: #{tpu_custom_call.1} parent=0 // loop_footer_branch
    %10 = sbr.rel target = $region3
  $region8: #{tpu_custom_call.1} parent=0 // loop_exit
    _

</llo_original>
